<compile_context>
chip_gen: v7x
topology: tpu7x:2x2x1
jax: 0.10.0
libtpu: 0.0.40
codegen_flags: <defaults>
</compile_context>

<pallas_src>
import functools

import jax
import jax.numpy as jnp
from jax.experimental import pallas as pl
from jax.experimental.pallas import tpu as pltpu


def _round_up(x, m):
    return ((x + m - 1) // m) * m


def _textcnn_kernel(filter_heights, out_chs,
                    emb_ref, w_all_ref, bias_ref, fcw_ref, fcb_ref, out_ref):
    """One batch tile: fused conv (all filter heights) + ReLU + max-pool + FC + sigmoid."""
    C = out_chs
    Bt, S, E = emb_ref.shape

    # One wide MXU matmul covering every filter height and tap.
    # (Bt, S, E) -> (Bt*S, E) is a free re-view (S is a multiple of 8/16).
    emb2d = emb_ref[...].reshape(Bt * S, E)                     # bf16
    p = jnp.dot(emb2d, w_all_ref[...],
                preferred_element_type=jnp.float32)             # (Bt*S, Ncols) f32
    p = p.reshape(Bt, S, -1)                                    # (Bt, S, Ncols)

    bias_all = bias_ref[...]                                    # (1, n*C) f32
    fcw_all = fcw_ref[...]                                      # (1, n*C) f32

    logits = jnp.zeros((Bt, 1), dtype=jnp.float32)
    tap = 0
    for i, fh in enumerate(filter_heights):
        L = S - fh + 1
        # Rebuild the conv output from shifted static slices of P (no windows).
        s = p[:, 0:L, tap * C:(tap + 1) * C]
        for j in range(1, fh):
            s = s + p[:, j:j + L, (tap + j) * C:(tap + j + 1) * C]
        tap += fh
        s = s + bias_all[:, i * C:(i + 1) * C][None, :, :]      # bias (1,1,C) bcast
        s = jnp.maximum(s, 0.0)                                 # ReLU (f32 VPU)
        pooled = jnp.max(s, axis=1)                             # time max-pool -> (Bt, C)
        # fc1 contribution: elementwise multiply + lane reduce (no (n*C,1) matmul).
        logits = logits + jnp.sum(pooled * fcw_all[:, i * C:(i + 1) * C],
                                  axis=1, keepdims=True)

    logits = logits + fcb_ref[...]                              # (Bt, 1)
    out_ref[...] = jax.nn.sigmoid(logits)


def textcnn_forward(x_tokens, emb_table, conv_weights, conv_biases, fc_w, fc_b,
                    filter_heights, *, mxu_dtype=jnp.bfloat16):
    """TextCNN forward.

    x_tokens: (B, S) int32 token ids
    emb_table: (V, E) float32
    conv_weights[i]: (C, 1, fh_i, E) float32 (PyTorch Conv2d layout)
    conv_biases[i]:  (C,) float32
    fc_w: (1, C * n_filters) float32 (PyTorch Linear layout), fc_b: (1,)
    """
    B, S = x_tokens.shape
    V, E = emb_table.shape
    C = conv_weights[0].shape[0]
    n = len(filter_heights)
    assert all(S >= fh for fh in filter_heights), "sequence shorter than a filter height"

    # --- batch tiling: rows per grid step, padded batch ---
    b_tile = min(128, _round_up(B, 8))
    b_pad = _round_up(B, b_tile)

    # Embedding gather stays as a plain-JAX XLA gather (pad tokens with id 0).
    x_pad = jnp.pad(x_tokens, ((0, b_pad - B), (0, 0)))
    emb = emb_table[x_pad].astype(mxu_dtype)                    # (b_pad, S, E)

    # Pack all conv taps into one wide weight: column ((tap_off_i + j)*C + c)
    # holds conv_w_i[c, 0, j, :]; zero-pad the N dim to a multiple of 128 lanes.
    blocks = []
    for fh, cw in zip(filter_heights, conv_weights):
        blk = jnp.transpose(cw[:, 0, :, :], (2, 1, 0)).reshape(E, fh * C)
        blocks.append(blk)
    w_all = jnp.concatenate(blocks, axis=1)                     # (E, sum(fh)*C)
    n_cols = w_all.shape[1]
    n_cols_pad = _round_up(n_cols, 128)
    w_all = jnp.pad(w_all, ((0, 0), (0, n_cols_pad - n_cols))).astype(mxu_dtype)

    bias_all = jnp.concatenate(
        [b.reshape(1, C) for b in conv_biases], axis=1).astype(jnp.float32)  # (1, n*C)
    fcw = fc_w.reshape(1, n * C).astype(jnp.float32)
    fcb = fc_b.reshape(1, 1).astype(jnp.float32)

    grid = (b_pad // b_tile,)
    kernel = functools.partial(_textcnn_kernel, tuple(filter_heights), C)

    out = pl.pallas_call(
        kernel,
        grid=grid,
        in_specs=[
            pl.BlockSpec((b_tile, S, E), lambda b: (b, 0, 0)),      # emb batch tile
            pl.BlockSpec((E, n_cols_pad), lambda b: (0, 0)),        # packed conv W (reused)
            pl.BlockSpec((1, n * C), lambda b: (0, 0)),             # conv biases
            pl.BlockSpec((1, n * C), lambda b: (0, 0)),             # fc weight row
            pl.BlockSpec((1, 1), lambda b: (0, 0)),                 # fc bias
        ],
        out_specs=pl.BlockSpec((b_tile, 1), lambda b: (b, 0)),
        out_shape=jax.ShapeDtypeStruct((b_pad, 1), jnp.float32),
        compiler_params=pltpu.CompilerParams(
            dimension_semantics=("parallel",),
            vmem_limit_bytes=32 * 1024 * 1024),
    )(emb, w_all, bias_all, fcw, fcb)
    return out[:B]


def _reference(x_tokens, emb_table, conv_weights, conv_biases, fc_w, fc_b,
               filter_heights):
    """Pure-JAX f32 reference mirroring the PyTorch module."""
    emb = emb_table[x_tokens]                                   # (B, S, E)
    S = emb.shape[1]
    pooled = []
    for fh, cw, cb in zip(filter_heights, conv_weights, conv_biases):
        L = S - fh + 1
        win = jnp.stack([emb[:, j:j + L, :] for j in range(fh)], axis=2)  # (B,L,fh,E)
        s = jnp.einsum('blje,cje->blc', win, cw[:, 0]) + cb[None, None, :]
        s = jnp.maximum(s, 0.0)
        pooled.append(jnp.max(s, axis=1))
    feat = jnp.concatenate(pooled, axis=1)                      # (B, n*C)
    logits = feat @ fc_w.T + fc_b
    return jax.nn.sigmoid(logits)


if __name__ == "__main__":
    # Small shapes consistent with the module.
    vocab_size = 50
    embd_size = 32
    out_chs = 8
    filter_heights = (3, 4, 5)
    batch = 2
    seq_len = 16

    key = jax.random.PRNGKey(0)
    keys = jax.random.split(key, 4 + 2 * len(filter_heights))

    # Deterministic synthetic parameters (shapes follow nn.Module.__init__).
    emb_table = jax.random.normal(keys[0], (vocab_size, embd_size),
                                  dtype=jnp.float32) * 0.1
    conv_weights = []
    conv_biases = []
    for i, fh in enumerate(filter_heights):
        fan_in = 1 * fh * embd_size
        bound = 1.0 / (fan_in ** 0.5)
        conv_weights.append(
            jax.random.uniform(keys[1 + 2 * i], (out_chs, 1, fh, embd_size),
                               minval=-bound, maxval=bound, dtype=jnp.float32))
        conv_biases.append(
            jax.random.uniform(keys[2 + 2 * i], (out_chs,),
                               minval=-bound, maxval=bound, dtype=jnp.float32))
    fc_in = out_chs * len(filter_heights)
    fc_bound = 1.0 / (fc_in ** 0.5)
    fc_w = jax.random.uniform(keys[-2], (1, fc_in),
                              minval=-fc_bound, maxval=fc_bound,
                              dtype=jnp.float32)
    fc_b = jax.random.uniform(keys[-1], (1,),
                              minval=-fc_bound, maxval=fc_bound,
                              dtype=jnp.float32)

    # Deterministic input token ids.
    x_tokens = jax.random.randint(keys[3], (batch, seq_len), 0, vocab_size,
                                  dtype=jnp.int32)

    probs = textcnn_forward(x_tokens, emb_table, conv_weights, conv_biases,
                            fc_w, fc_b, filter_heights)
    probs = jax.block_until_ready(probs)
    assert probs.shape == (batch, 1)

    # Sanity check against a pure-JAX f32 reference (bf16 MXU inputs -> loose tol).
    ref = jax.block_until_ready(
        _reference(x_tokens, emb_table, conv_weights, conv_biases,
                   fc_w, fc_b, filter_heights))
    assert jnp.all(jnp.isfinite(probs))
    assert jnp.max(jnp.abs(probs - ref)) < 5e-2

    print("KERNEL_OK")
</pallas_src>

<mosaic_0001>
module attributes {stable_mosaic.version = 11 : i64} {
  func.func @_textcnn_kernel(%arg0: i32, %arg1: memref<8x16x32xbf16, #tpu.memory_space<vmem>>, %arg2: memref<32x128xbf16, #tpu.memory_space<vmem>>, %arg3: memref<1x24xf32, #tpu.memory_space<vmem>>, %arg4: memref<1x24xf32, #tpu.memory_space<vmem>>, %arg5: memref<1x1xf32, #tpu.memory_space<vmem>>, %arg6: memref<8x1xf32, #tpu.memory_space<vmem>>) attributes {dimension_semantics = [#tpu.dimension_semantics<parallel>], iteration_bounds = array<i64: 1>, scalar_prefetch = 0 : i64, scratch_operands = 0 : i64, tpu.core_type = #tpu.core_type<tc>, window_params = [{transform_indices = @transform_0, window_bounds = array<i64: 8, 16, 32>}, {pipeline_mode = #tpu.pipeline_mode<synchronous>, transform_indices = @transform_1, window_bounds = array<i64: 32, 128>}, {pipeline_mode = #tpu.pipeline_mode<synchronous>, transform_indices = @transform_2, window_bounds = array<i64: 1, 24>}, {pipeline_mode = #tpu.pipeline_mode<synchronous>, transform_indices = @transform_3, window_bounds = array<i64: 1, 24>}, {pipeline_mode = #tpu.pipeline_mode<synchronous>, transform_indices = @transform_4, window_bounds = array<i64: 1, 1>}, {transform_indices = @transform_5, window_bounds = array<i64: 8, 1>}]} {
    %c0 = arith.constant 0 : index
    %c0_0 = arith.constant 0 : index
    %c0_1 = arith.constant 0 : index
    %0 = vector.load %arg1[%c0, %c0_0, %c0_1] : memref<8x16x32xbf16, #tpu.memory_space<vmem>>, vector<8x16x32xbf16>
    %1 = vector.shape_cast %0 : vector<8x16x32xbf16> to vector<128x32xbf16>
    %c0_2 = arith.constant 0 : index
    %c0_3 = arith.constant 0 : index
    %2 = vector.load %arg2[%c0_2, %c0_3] : memref<32x128xbf16, #tpu.memory_space<vmem>>, vector<32x128xbf16>
    %cst = arith.constant dense<0.000000e+00> : vector<128x128xf32>
    %3 = tpu.matmul %1, %2, %cst {dimension_numbers = #tpu.dot_dimension_numbers<[1], [0], [0], [1], [0, 0, 1, 1], [], []>} : vector<128x32xbf16>, vector<32x128xbf16>, vector<128x128xf32> -> vector<128x128xf32>
    %4 = vector.shape_cast %3 : vector<128x128xf32> to vector<8x16x128xf32>
    %c0_4 = arith.constant 0 : index
    %c0_5 = arith.constant 0 : index
    %5 = vector.load %arg3[%c0_4, %c0_5] : memref<1x24xf32, #tpu.memory_space<vmem>>, vector<1x24xf32>
    %c0_6 = arith.constant 0 : index
    %c0_7 = arith.constant 0 : index
    %6 = vector.load %arg4[%c0_6, %c0_7] : memref<1x24xf32, #tpu.memory_space<vmem>>, vector<1x24xf32>
    %cst_8 = arith.constant 0.000000e+00 : f32
    %7 = vector.broadcast %cst_8 : f32 to vector<8x1xf32>
    %8 = vector.extract_strided_slice %4 {offsets = [0, 0, 0], sizes = [8, 14, 8], strides = [1, 1, 1]} : vector<8x16x128xf32> to vector<8x14x8xf32>
    %9 = vector.extract_strided_slice %4 {offsets = [0, 1, 8], sizes = [8, 14, 8], strides = [1, 1, 1]} : vector<8x16x128xf32> to vector<8x14x8xf32>
    %10 = arith.addf %8, %9 : vector<8x14x8xf32>
    %11 = vector.extract_strided_slice %4 {offsets = [0, 2, 16], sizes = [8, 14, 8], strides = [1, 1, 1]} : vector<8x16x128xf32> to vector<8x14x8xf32>
    %12 = arith.addf %10, %11 : vector<8x14x8xf32>
    %13 = vector.extract_strided_slice %5 {offsets = [0, 0], sizes = [1, 8], strides = [1, 1]} : vector<1x24xf32> to vector<1x8xf32>
    %14 = vector.shape_cast %13 : vector<1x8xf32> to vector<1x1x8xf32>
    %15 = vector.broadcast %14 : vector<1x1x8xf32> to vector<8x14x8xf32>
    %16 = arith.addf %12, %15 : vector<8x14x8xf32>
    %cst_9 = arith.constant 0.000000e+00 : f32
    %17 = vector.broadcast %cst_9 : f32 to vector<8x14x8xf32>
    %18 = arith.maximumf %16, %17 : vector<8x14x8xf32>
    %cst_10 = arith.constant dense<0xFF800000> : vector<8x8xf32>
    %19 = vector.multi_reduction <maximumf>, %18, %cst_10 [1] : vector<8x14x8xf32> to vector<8x8xf32>
    %20 = vector.extract_strided_slice %6 {offsets = [0, 0], sizes = [1, 8], strides = [1, 1]} : vector<1x24xf32> to vector<1x8xf32>
    %21 = vector.broadcast %20 : vector<1x8xf32> to vector<8x8xf32>
    %22 = arith.mulf %19, %21 : vector<8x8xf32>
    %cst_11 = arith.constant dense<0.000000e+00> : vector<8xf32>
    %23 = vector.multi_reduction <add>, %22, %cst_11 [1] : vector<8x8xf32> to vector<8xf32>
    %24 = vector.shape_cast %23 : vector<8xf32> to vector<8x1xf32>
    %25 = arith.addf %7, %24 : vector<8x1xf32>
    %26 = vector.extract_strided_slice %4 {offsets = [0, 0, 24], sizes = [8, 13, 8], strides = [1, 1, 1]} : vector<8x16x128xf32> to vector<8x13x8xf32>
    %27 = vector.extract_strided_slice %4 {offsets = [0, 1, 32], sizes = [8, 13, 8], strides = [1, 1, 1]} : vector<8x16x128xf32> to vector<8x13x8xf32>
    %28 = arith.addf %26, %27 : vector<8x13x8xf32>
    %29 = vector.extract_strided_slice %4 {offsets = [0, 2, 40], sizes = [8, 13, 8], strides = [1, 1, 1]} : vector<8x16x128xf32> to vector<8x13x8xf32>
    %30 = arith.addf %28, %29 : vector<8x13x8xf32>
    %31 = vector.extract_strided_slice %4 {offsets = [0, 3, 48], sizes = [8, 13, 8], strides = [1, 1, 1]} : vector<8x16x128xf32> to vector<8x13x8xf32>
    %32 = arith.addf %30, %31 : vector<8x13x8xf32>
    %33 = vector.extract_strided_slice %5 {offsets = [0, 8], sizes = [1, 8], strides = [1, 1]} : vector<1x24xf32> to vector<1x8xf32>
    %34 = vector.shape_cast %33 : vector<1x8xf32> to vector<1x1x8xf32>
    %35 = vector.broadcast %34 : vector<1x1x8xf32> to vector<8x13x8xf32>
    %36 = arith.addf %32, %35 : vector<8x13x8xf32>
    %cst_12 = arith.constant 0.000000e+00 : f32
    %37 = vector.broadcast %cst_12 : f32 to vector<8x13x8xf32>
    %38 = arith.maximumf %36, %37 : vector<8x13x8xf32>
    %cst_13 = arith.constant dense<0xFF800000> : vector<8x8xf32>
    %39 = vector.multi_reduction <maximumf>, %38, %cst_13 [1] : vector<8x13x8xf32> to vector<8x8xf32>
    %40 = vector.extract_strided_slice %6 {offsets = [0, 8], sizes = [1, 8], strides = [1, 1]} : vector<1x24xf32> to vector<1x8xf32>
    %41 = vector.broadcast %40 : vector<1x8xf32> to vector<8x8xf32>
    %42 = arith.mulf %39, %41 : vector<8x8xf32>
    %cst_14 = arith.constant dense<0.000000e+00> : vector<8xf32>
    %43 = vector.multi_reduction <add>, %42, %cst_14 [1] : vector<8x8xf32> to vector<8xf32>
    %44 = vector.shape_cast %43 : vector<8xf32> to vector<8x1xf32>
    %45 = arith.addf %25, %44 : vector<8x1xf32>
    %46 = vector.extract_strided_slice %4 {offsets = [0, 0, 56], sizes = [8, 12, 8], strides = [1, 1, 1]} : vector<8x16x128xf32> to vector<8x12x8xf32>
    %47 = vector.extract_strided_slice %4 {offsets = [0, 1, 64], sizes = [8, 12, 8], strides = [1, 1, 1]} : vector<8x16x128xf32> to vector<8x12x8xf32>
    %48 = arith.addf %46, %47 : vector<8x12x8xf32>
    %49 = vector.extract_strided_slice %4 {offsets = [0, 2, 72], sizes = [8, 12, 8], strides = [1, 1, 1]} : vector<8x16x128xf32> to vector<8x12x8xf32>
    %50 = arith.addf %48, %49 : vector<8x12x8xf32>
    %51 = vector.extract_strided_slice %4 {offsets = [0, 3, 80], sizes = [8, 12, 8], strides = [1, 1, 1]} : vector<8x16x128xf32> to vector<8x12x8xf32>
    %52 = arith.addf %50, %51 : vector<8x12x8xf32>
    %53 = vector.extract_strided_slice %4 {offsets = [0, 4, 88], sizes = [8, 12, 8], strides = [1, 1, 1]} : vector<8x16x128xf32> to vector<8x12x8xf32>
    %54 = arith.addf %52, %53 : vector<8x12x8xf32>
    %55 = vector.extract_strided_slice %5 {offsets = [0, 16], sizes = [1, 8], strides = [1, 1]} : vector<1x24xf32> to vector<1x8xf32>
    %56 = vector.shape_cast %55 : vector<1x8xf32> to vector<1x1x8xf32>
    %57 = vector.broadcast %56 : vector<1x1x8xf32> to vector<8x12x8xf32>
    %58 = arith.addf %54, %57 : vector<8x12x8xf32>
    %cst_15 = arith.constant 0.000000e+00 : f32
    %59 = vector.broadcast %cst_15 : f32 to vector<8x12x8xf32>
    %60 = arith.maximumf %58, %59 : vector<8x12x8xf32>
    %cst_16 = arith.constant dense<0xFF800000> : vector<8x8xf32>
    %61 = vector.multi_reduction <maximumf>, %60, %cst_16 [1] : vector<8x12x8xf32> to vector<8x8xf32>
    %62 = vector.extract_strided_slice %6 {offsets = [0, 16], sizes = [1, 8], strides = [1, 1]} : vector<1x24xf32> to vector<1x8xf32>
    %63 = vector.broadcast %62 : vector<1x8xf32> to vector<8x8xf32>
    %64 = arith.mulf %61, %63 : vector<8x8xf32>
    %cst_17 = arith.constant dense<0.000000e+00> : vector<8xf32>
    %65 = vector.multi_reduction <add>, %64, %cst_17 [1] : vector<8x8xf32> to vector<8xf32>
    %66 = vector.shape_cast %65 : vector<8xf32> to vector<8x1xf32>
    %67 = arith.addf %45, %66 : vector<8x1xf32>
    %c0_18 = arith.constant 0 : index
    %c0_19 = arith.constant 0 : index
    %68 = vector.load %arg5[%c0_18, %c0_19] : memref<1x1xf32, #tpu.memory_space<vmem>>, vector<1x1xf32>
    %69 = vector.broadcast %68 : vector<1x1xf32> to vector<8x1xf32>
    %70 = arith.addf %67, %69 : vector<8x1xf32>
    %71 = arith.negf %70 : vector<8x1xf32>
    %72 = math.exp %71 : vector<8x1xf32>
    %cst_20 = arith.constant 1.000000e+00 : f32
    %73 = vector.broadcast %cst_20 : f32 to vector<8x1xf32>
    %74 = arith.addf %73, %72 : vector<8x1xf32>
    %75 = arith.divf %73, %74 : vector<8x1xf32>
    %c0_21 = arith.constant 0 : index
    %c0_22 = arith.constant 0 : index
    %76 = vector.load %arg6[%c0_21, %c0_22] : memref<8x1xf32, #tpu.memory_space<vmem>>, vector<8x1xf32>
    tpu.vector_store %arg6[%c0_21, %c0_22], %75 {strides = array<i32>} : memref<8x1xf32, #tpu.memory_space<vmem>>, vector<8x1xf32>,
    return
  }
  func.func @transform_0(%arg0: i32) -> (i32, i32, i32) {
    %c0_i32 = arith.constant 0 : i32
    %c0_i32_0 = arith.constant 0 : i32
    %c0_i32_1 = arith.constant 0 : i32
    return %arg0, %c0_i32, %c0_i32_0 : i32, i32, i32
  }
  func.func @transform_1(%arg0: i32) -> (i32, i32) {
    %c0_i32 = arith.constant 0 : i32
    %c0_i32_0 = arith.constant 0 : i32
    %c0_i32_1 = arith.constant 0 : i32
    return %c0_i32, %c0_i32_0 : i32, i32
  }
  func.func @transform_2(%arg0: i32) -> (i32, i32) {
    %c0_i32 = arith.constant 0 : i32
    %c0_i32_0 = arith.constant 0 : i32
    %c0_i32_1 = arith.constant 0 : i32
    return %c0_i32, %c0_i32_0 : i32, i32
  }
  func.func @transform_3(%arg0: i32) -> (i32, i32) {
    %c0_i32 = arith.constant 0 : i32
    %c0_i32_0 = arith.constant 0 : i32
    %c0_i32_1 = arith.constant 0 : i32
    return %c0_i32, %c0_i32_0 : i32, i32
  }
  func.func @transform_4(%arg0: i32) -> (i32, i32) {
    %c0_i32 = arith.constant 0 : i32
    %c0_i32_0 = arith.constant 0 : i32
    %c0_i32_1 = arith.constant 0 : i32
    return %c0_i32, %c0_i32_0 : i32, i32
  }
  func.func @transform_5(%arg0: i32) -> (i32, i32) {
    %c0_i32 = arith.constant 0 : i32
    %c0_i32_0 = arith.constant 0 : i32
    return %arg0, %c0_i32 : i32, i32
  }
}

</mosaic_0001>

<llo_original>
// kernel: tpu_custom_call.1
$region0: #{tpu_custom_call.1}
  #allocation0 [shape = 'u32[]', space=smem, size = 0x4, offset = 0x4, fixed_abs, tag = 'smem constant byte address 0x4 - core index']
  #allocation1 [shape = 'u32[144,128]{1,0:T(1,128)}', space=vmem, size = 0x12000, scoped, tag = 'internal scratch']
  #allocation2 [shape = 'f32[1,1]{1,0:T(1,128)S(1)}', space=vmem, size = 0x200, scoped, tag = 'scoped memory for tpu_custom_call.1']
  %s0 = inlined_call_operand.hbm [shape: bf16[8,16,32], index: 0, kind: input, shape index: {}]
  %s1 = inlined_call_operand.hbm [shape: bf16[32,128], index: 1, kind: input, shape index: {}]
  %s2 = inlined_call_operand.vmem [shape: f32[1,24], index: 2, kind: input, shape index: {}]
  %s3 = inlined_call_operand.vmem [shape: f32[1,24], index: 3, kind: input, shape index: {}]
  %s4 = inlined_call_operand.<no memory space> [shape: f32[1,1], index: 4, kind: input, shape index: {}]
  %s5 = inlined_call_operand.vmem [shape: f32[8,1], index: 5, kind: output, shape index: {}]
  %s6 = sld [smem:[#allocation0]]
  $region38: #{tpu_custom_call.1} parent=0
    _
  %s8 = ssub.s32 1, %s6
  %s9 = scalar_select 0, %s8, %s6
  %v10 = vstv %s4
  %11 = vst [vmem:[#allocation2] sm:$0x1] %v10
  $region1: #{tpu_custom_call.1} parent=0
    #allocation3 [shape = 'u8[32768]{0}', space=vmem, size = 0x8000, scoped, tag = 'input window, operand 0, single buffered']
    #allocation4 [shape = 's32[1]{0}', space=sflag, size = 0x4, scoped, tag = 'scoped memory for tpu_custom_call.1']
    #allocation5 [shape = 'u8[8192]{0}', space=vmem, size = 0x2000, scoped, tag = 'input window, operand 1, single buffered']
    #allocation6 [shape = 's32[1]{0}', space=sflag, size = 0x4, scoped, tag = 'scoped memory for tpu_custom_call.1']
    %12 = vsyncpa [#allocation4], 0
    %13 = vsyncpa [#allocation6], 0
    // Predicated region
    $region2: #{tpu_custom_call.1} parent=1 // pred_check
      _
    $region3: #{tpu_custom_call.1} parent=1 // pred_check_branch
      %15 = sbr.rel (0) target = $region5
    $region4: #{tpu_custom_call.1} parent=1 // pred_region
      %s17 = ssub.s32 1024, 1024
      %18 = vsyncadd [#allocation4], %s17
      %s19 = sshll.u32 [#allocation3], 4
      %s20 = int_to_ptr.vmem [resolvable:$true] %s19
      %25 = dma.hbm_to_vmem [thread:$0]  %s0, 1024, %s20, [#allocation4], 64, 64, 4
    $region5: #{tpu_custom_call.1} parent=1 // pred_fallthru
      _
    // Predicated region
    $region6: #{tpu_custom_call.1} parent=1 // pred_check
      _
    $region7: #{tpu_custom_call.1} parent=1 // pred_check_branch
      %27 = sbr.rel (0) target = $region9
    $region8: #{tpu_custom_call.1} parent=1 // pred_region
      %s29 = ssub.s32 256, 256
      %30 = vsyncadd [#allocation6], %s29
      %s31 = sshll.u32 [#allocation5], 4
      %s32 = int_to_ptr.vmem [resolvable:$true] %s31
      %37 = dma.hbm_to_vmem [thread:$0]  %s1, 256, %s32, [#allocation6], 64, 64, 4
    $region9: #{tpu_custom_call.1} parent=1 // pred_fallthru
      _
    // Predicated region
    $region10: #{tpu_custom_call.1} parent=1 // pred_check
      _
    $region11: #{tpu_custom_call.1} parent=1 // pred_check_branch
      %39 = sbr.rel (0) target = $region13
    $region12: #{tpu_custom_call.1} parent=1 // pred_region
      _
    $region13: #{tpu_custom_call.1} parent=1 // pred_fallthru
      _
    // Predicated region
    $region14: #{tpu_custom_call.1} parent=1 // pred_check
      _
    $region15: #{tpu_custom_call.1} parent=1 // pred_check_branch
      %41 = sbr.rel (0) target = $region17
    $region16: #{tpu_custom_call.1} parent=1 // pred_region
      _
    $region17: #{tpu_custom_call.1} parent=1 // pred_fallthru
      _
    // Predicated region
    $region18: #{tpu_custom_call.1} parent=1 // pred_check
      _
    $region19: #{tpu_custom_call.1} parent=1 // pred_check_branch
      %43 = sbr.rel (0) target = $region21
    $region20: #{tpu_custom_call.1} parent=1 // pred_region
      _
    $region21: #{tpu_custom_call.1} parent=1 // pred_fallthru
      _
    // Predicated region
    $region22: #{tpu_custom_call.1} parent=1 // pred_check
      _
    $region23: #{tpu_custom_call.1} parent=1 // pred_check_branch
      %45 = sbr.rel (0) target = $region25
    $region24: #{tpu_custom_call.1} parent=1 // pred_region
      %46 = dma.done [#allocation4], 1024
    $region25: #{tpu_custom_call.1} parent=1 // pred_fallthru
      _
    // Predicated region
    $region26: #{tpu_custom_call.1} parent=1 // pred_check
      _
    $region27: #{tpu_custom_call.1} parent=1 // pred_check_branch
      %48 = sbr.rel (0) target = $region29
    $region28: #{tpu_custom_call.1} parent=1 // pred_region
      %49 = dma.done [#allocation6], 256
    $region29: #{tpu_custom_call.1} parent=1 // pred_fallthru
      _
    %v51 = vld [vmem:[#allocation3] sm:$0xf]
    %v52 = vld [vmem:[#allocation3 + $0x4] sm:$0xf]
    %v53 = vld [vmem:[#allocation3 + $0x8] sm:$0xf]
    %v54 = vld [vmem:[#allocation3 + $0xc] sm:$0xf]
    %v55 = vld [vmem:[#allocation3 + $0x10] sm:$0xf]
    %v56 = vld [vmem:[#allocation3 + $0x14] sm:$0xf]
    %v57 = vld [vmem:[#allocation3 + $0x18] sm:$0xf]
    %v58 = vld [vmem:[#allocation3 + $0x1c] sm:$0xf]
    %v59 = vld [vmem:[#allocation3 + $0x20] sm:$0xf]
    %v60 = vld [vmem:[#allocation3 + $0x24] sm:$0xf]
    %v61 = vld [vmem:[#allocation3 + $0x28] sm:$0xf]
    %v62 = vld [vmem:[#allocation3 + $0x2c] sm:$0xf]
    %v63 = vld [vmem:[#allocation3 + $0x30] sm:$0xf]
    %v64 = vld [vmem:[#allocation3 + $0x34] sm:$0xf]
    %v65 = vld [vmem:[#allocation3 + $0x38] sm:$0xf]
    %v66 = vld [vmem:[#allocation3 + $0x3c] sm:$0xf]
    %v67 = vld [vmem:[#allocation5] sm:$0xf]
    %v68 = vld [vmem:[#allocation5 + $0x4] sm:$0xf]
    %v69 = vld [vmem:[#allocation5 + $0x8] sm:$0xf]
    %v70 = vld [vmem:[#allocation5 + $0xc] sm:$0xf]
    %v87 = vunpack.c.l.b16 %v51
    %v88 = vunpack.c.l.b16 %v52
    %v89 = vunpack.c.l.b16 %v53
    %v90 = vunpack.c.l.b16 %v54
    %v91 = vunpack.c.l.b16 %v55
    %v92 = vunpack.c.l.b16 %v56
    %v93 = vunpack.c.l.b16 %v57
    %v94 = vunpack.c.l.b16 %v58
    %v95 = vunpack.c.l.b16 %v59
    %v96 = vunpack.c.l.b16 %v60
    %v97 = vunpack.c.l.b16 %v61
    %v98 = vunpack.c.l.b16 %v62
    %v99 = vunpack.c.l.b16 %v63
    %v100 = vunpack.c.l.b16 %v64
    %v101 = vunpack.c.l.b16 %v65
    %v102 = vunpack.c.l.b16 %v66
    %v103 = vpack.c.b16 %v88, %v87
    %v104 = vpack.c.b16 %v90, %v89
    %v105 = vpack.c.b16 %v92, %v91
    %v106 = vpack.c.b16 %v94, %v93
    %v107 = vpack.c.b16 %v96, %v95
    %v108 = vpack.c.b16 %v98, %v97
    %v109 = vpack.c.b16 %v100, %v99
    %v110 = vpack.c.b16 %v102, %v101
    %v115 = vunpack.c.l.b16 %v67
    %v116 = vunpack.c.l.b16 %v68
    %v117 = vunpack.c.l.b16 %v69
    %v118 = vunpack.c.l.b16 %v70
    %v119 = vpack.c.b16 %v116, %v115
    %v120 = vpack.c.b16 %v118, %v117
    %vm123 = vcmask 261120
    %v125 = vsel %vm123, %v103, 0
    %v128 = vsel %vm123, %v104, 0
    %v131 = vsel %vm123, %v105, 0
    %v134 = vsel %vm123, %v106, 0
    %v137 = vsel %vm123, %v107, 0
    %v140 = vsel %vm123, %v108, 0
    %v143 = vsel %vm123, %v109, 0
    %v146 = vsel %vm123, %v110, 0
    %148 = vmatprep.subr.bf16.mxu0 0
    %149 = vmatpush1.bf16.msra.mxu0 %v119
    %150 = vmatprep.subr.bf16.mxu0 0
    %151 = vmatpush1.bf16.msra.mxu0 %v120
    %152 = vmatprep.subr.bf16.mxu0 0
    %153 = vmatpush1.bf16.msra.mxu0 0
    %154 = vmatprep.subr.bf16.mxu0 0
    %155 = vmatpush1.bf16.msra.mxu0 0
    %156 = vmatprep.subr.bf16.mxu0 0
    %157 = vmatpush1.bf16.msra.mxu0 0
    %158 = vmatprep.subr.bf16.mxu0 0
    %159 = vmatpush1.bf16.msra.mxu0 0
    %160 = vmatprep.subr.bf16.mxu0 0
    %161 = vmatpush1.bf16.msra.mxu0 0
    %162 = vmatprep.subr.bf16.mxu0 0
    %163 = vmatpush1.bf16.msra.mxu0 0
    %164 = vmatprep.subr.bf16.mxu0 0
    %165 = vmatpush1.bf16.msra.mxu0 0
    %166 = vmatprep.subr.bf16.mxu0 0
    %167 = vmatpush1.bf16.msra.mxu0 0
    %168 = vmatprep.subr.bf16.mxu0 0
    %169 = vmatpush1.bf16.msra.mxu0 0
    %170 = vmatprep.subr.bf16.mxu0 0
    %171 = vmatpush1.bf16.msra.mxu0 0
    %172 = vmatprep.subr.bf16.mxu0 0
    %173 = vmatpush1.bf16.msra.mxu0 0
    %174 = vmatprep.subr.bf16.mxu0 0
    %175 = vmatpush1.bf16.msra.mxu0 0
    %176 = vmatprep.subr.bf16.mxu0 0
    %177 = vmatpush1.bf16.msra.mxu0 0
    %178 = vmatprep.subr.bf16.mxu0 0
    %179 = vmatpush1.bf16.msra.mxu0 0
    %180 = vmatprep.mubr.bf16.mxu0 0
    %181 = vmatmul.mubr.bf16.gmra.mrb[0].mxu0 %v125
    %v182 = vpop.f32.mrb[0].mxu0
    %v183 = vadd.f32 0.0, %v182
    %v184 = vpop.f32.mrb[0].mxu0
    %v185 = vpop.f32.mrb[0].mxu0
    %v186 = vadd.f32 0.0, %v185
    %v187 = vpop.f32.mrb[0].mxu0
    %188 = vmatprep.mubr.bf16.mxu0 0
    %189 = vmatmul.mubr.bf16.gmra.mrb[0].mxu0 %v128
    %v190 = vpop.f32.mrb[0].mxu0
    %v191 = vadd.f32 0.0, %v190
    %v192 = vpop.f32.mrb[0].mxu0
    %v193 = vpop.f32.mrb[0].mxu0
    %v194 = vadd.f32 0.0, %v193
    %v195 = vpop.f32.mrb[0].mxu0
    %196 = vmatprep.mubr.bf16.mxu0 0
    %197 = vmatmul.mubr.bf16.gmra.mrb[0].mxu0 %v131
    %v198 = vpop.f32.mrb[0].mxu0
    %v199 = vadd.f32 0.0, %v198
    %v200 = vpop.f32.mrb[0].mxu0
    %v201 = vpop.f32.mrb[0].mxu0
    %v202 = vadd.f32 0.0, %v201
    %v203 = vpop.f32.mrb[0].mxu0
    %204 = vmatprep.mubr.bf16.mxu0 0
    %205 = vmatmul.mubr.bf16.gmra.mrb[0].mxu0 %v134
    %v206 = vpop.f32.mrb[0].mxu0
    %v207 = vadd.f32 0.0, %v206
    %v208 = vpop.f32.mrb[0].mxu0
    %v209 = vpop.f32.mrb[0].mxu0
    %v210 = vadd.f32 0.0, %v209
    %v211 = vpop.f32.mrb[0].mxu0
    %212 = vmatprep.mubr.bf16.mxu0 0
    %213 = vmatmul.mubr.bf16.gmra.mrb[0].mxu0 %v137
    %v214 = vpop.f32.mrb[0].mxu0
    %v215 = vadd.f32 0.0, %v214
    %v216 = vpop.f32.mrb[0].mxu0
    %v217 = vpop.f32.mrb[0].mxu0
    %v218 = vadd.f32 0.0, %v217
    %v219 = vpop.f32.mrb[0].mxu0
    %220 = vmatprep.mubr.bf16.mxu0 0
    %221 = vmatmul.mubr.bf16.gmra.mrb[0].mxu0 %v140
    %v222 = vpop.f32.mrb[0].mxu0
    %v223 = vadd.f32 0.0, %v222
    %v224 = vpop.f32.mrb[0].mxu0
    %v225 = vpop.f32.mrb[0].mxu0
    %v226 = vadd.f32 0.0, %v225
    %v227 = vpop.f32.mrb[0].mxu0
    %228 = vmatprep.mubr.bf16.mxu0 0
    %229 = vmatmul.mubr.bf16.gmra.mrb[0].mxu0 %v143
    %v230 = vpop.f32.mrb[0].mxu0
    %v231 = vadd.f32 0.0, %v230
    %v232 = vpop.f32.mrb[0].mxu0
    %v233 = vpop.f32.mrb[0].mxu0
    %v234 = vadd.f32 0.0, %v233
    %v235 = vpop.f32.mrb[0].mxu0
    %236 = vmatprep.mubr.bf16.mxu0 0
    %237 = vmatmul.mubr.bf16.gmra.mrb[0].mxu0 %v146
    %v238 = vpop.f32.mrb[0].mxu0
    %v239 = vadd.f32 0.0, %v238
    %v240 = vpop.f32.mrb[0].mxu0
    %v241 = vpop.f32.mrb[0].mxu0
    %v242 = vadd.f32 0.0, %v241
    %v243 = vpop.f32.mrb[0].mxu0
    %244 = vdwg.mxu0
    %v245 = vld [vmem:[%s2] sm:$0x1]
    %v246 = vld [vmem:[%s3] sm:$0x1]
    %vm263 = vcmask 1046528
    %v264 = vrot.slane %v183, 1
    %v265 = vrot.slane %v186, 1
    %v266 = vsel %vm263, %v264, %v265
    %v267 = vrot.slane %v191, 1
    %v268 = vrot.slane %v194, 1
    %v269 = vsel %vm263, %v267, %v268
    %v270 = vrot.slane %v199, 1
    %v271 = vrot.slane %v202, 1
    %v272 = vsel %vm263, %v270, %v271
    %v273 = vrot.slane %v207, 1
    %v274 = vrot.slane %v210, 1
    %v275 = vsel %vm263, %v273, %v274
    %v276 = vrot.slane %v215, 1
    %v277 = vrot.slane %v218, 1
    %v278 = vsel %vm263, %v276, %v277
    %v279 = vrot.slane %v223, 1
    %v280 = vrot.slane %v226, 1
    %v281 = vsel %vm263, %v279, %v280
    %v282 = vrot.slane %v231, 1
    %v283 = vrot.slane %v234, 1
    %v284 = vsel %vm263, %v282, %v283
    %v285 = vrot.slane %v239, 1
    %v286 = vrot.slane %v242, 1
    %v287 = vsel %vm263, %v285, %v286
    %288 = vrot.lane.b32.xlu0 %v266, 120
    %v289 = vpop.permute.xlu0 %288
    %290 = vrot.lane.b32.xlu0 %v265, 120
    %v291 = vpop.permute.xlu0 %290
    %292 = vrot.lane.b32.xlu0 %v269, 120
    %v293 = vpop.permute.xlu0 %292
    %294 = vrot.lane.b32.xlu0 %v268, 120
    %v295 = vpop.permute.xlu0 %294
    %296 = vrot.lane.b32.xlu0 %v272, 120
    %v297 = vpop.permute.xlu0 %296
    %298 = vrot.lane.b32.xlu0 %v271, 120
    %v299 = vpop.permute.xlu0 %298
    %300 = vrot.lane.b32.xlu0 %v275, 120
    %v301 = vpop.permute.xlu0 %300
    %302 = vrot.lane.b32.xlu0 %v274, 120
    %v303 = vpop.permute.xlu0 %302
    %304 = vrot.lane.b32.xlu0 %v278, 120
    %v305 = vpop.permute.xlu0 %304
    %306 = vrot.lane.b32.xlu0 %v277, 120
    %v307 = vpop.permute.xlu0 %306
    %308 = vrot.lane.b32.xlu0 %v281, 120
    %v309 = vpop.permute.xlu0 %308
    %310 = vrot.lane.b32.xlu0 %v280, 120
    %v311 = vpop.permute.xlu0 %310
    %312 = vrot.lane.b32.xlu0 %v284, 120
    %v313 = vpop.permute.xlu0 %312
    %314 = vrot.lane.b32.xlu0 %v283, 120
    %v315 = vpop.permute.xlu0 %314
    %316 = vrot.lane.b32.xlu0 %v287, 120
    %v317 = vpop.permute.xlu0 %316
    %318 = vrot.lane.b32.xlu0 %v286, 120
    %v319 = vpop.permute.xlu0 %318
    %v336 = vadd.f32 %v183, %v289
    %v337 = vadd.f32 %v186, %v291
    %v338 = vadd.f32 %v191, %v293
    %v339 = vadd.f32 %v194, %v295
    %v340 = vadd.f32 %v199, %v297
    %v341 = vadd.f32 %v202, %v299
    %v342 = vadd.f32 %v207, %v301
    %v343 = vadd.f32 %v210, %v303
    %v344 = vadd.f32 %v215, %v305
    %v345 = vadd.f32 %v218, %v307
    %v346 = vadd.f32 %v223, %v309
    %v347 = vadd.f32 %v226, %v311
    %v348 = vadd.f32 %v231, %v313
    %v349 = vadd.f32 %v234, %v315
    %v350 = vadd.f32 %v239, %v317
    %v351 = vadd.f32 %v242, %v319
    %vm352 = vcmask 1045504
    %v353 = vrot.slane %v183, 2
    %v354 = vrot.slane %v186, 2
    %v355 = vsel %vm352, %v353, %v354
    %v356 = vrot.slane %v191, 2
    %v357 = vrot.slane %v194, 2
    %v358 = vsel %vm352, %v356, %v357
    %v359 = vrot.slane %v199, 2
    %v360 = vrot.slane %v202, 2
    %v361 = vsel %vm352, %v359, %v360
    %v362 = vrot.slane %v207, 2
    %v363 = vrot.slane %v210, 2
    %v364 = vsel %vm352, %v362, %v363
    %v365 = vrot.slane %v215, 2
    %v366 = vrot.slane %v218, 2
    %v367 = vsel %vm352, %v365, %v366
    %v368 = vrot.slane %v223, 2
    %v369 = vrot.slane %v226, 2
    %v370 = vsel %vm352, %v368, %v369
    %v371 = vrot.slane %v231, 2
    %v372 = vrot.slane %v234, 2
    %v373 = vsel %vm352, %v371, %v372
    %v374 = vrot.slane %v239, 2
    %v375 = vrot.slane %v242, 2
    %v376 = vsel %vm352, %v374, %v375
    %377 = vrot.lane.b32.xlu0 %v355, 112
    %v378 = vpop.permute.xlu0 %377
    %379 = vrot.lane.b32.xlu0 %v354, 112
    %v380 = vpop.permute.xlu0 %379
    %381 = vrot.lane.b32.xlu0 %v358, 112
    %v382 = vpop.permute.xlu0 %381
    %383 = vrot.lane.b32.xlu0 %v357, 112
    %v384 = vpop.permute.xlu0 %383
    %385 = vrot.lane.b32.xlu0 %v361, 112
    %v386 = vpop.permute.xlu0 %385
    %387 = vrot.lane.b32.xlu0 %v360, 112
    %v388 = vpop.permute.xlu0 %387
    %389 = vrot.lane.b32.xlu0 %v364, 112
    %v390 = vpop.permute.xlu0 %389
    %391 = vrot.lane.b32.xlu0 %v363, 112
    %v392 = vpop.permute.xlu0 %391
    %393 = vrot.lane.b32.xlu0 %v367, 112
    %v394 = vpop.permute.xlu0 %393
    %395 = vrot.lane.b32.xlu0 %v366, 112
    %v396 = vpop.permute.xlu0 %395
    %397 = vrot.lane.b32.xlu0 %v370, 112
    %v398 = vpop.permute.xlu0 %397
    %399 = vrot.lane.b32.xlu0 %v369, 112
    %v400 = vpop.permute.xlu0 %399
    %401 = vrot.lane.b32.xlu0 %v373, 112
    %v402 = vpop.permute.xlu0 %401
    %403 = vrot.lane.b32.xlu0 %v372, 112
    %v404 = vpop.permute.xlu0 %403
    %405 = vrot.lane.b32.xlu0 %v376, 112
    %v406 = vpop.permute.xlu0 %405
    %407 = vrot.lane.b32.xlu0 %v375, 112
    %v408 = vpop.permute.xlu0 %407
    %v425 = vadd.f32 %v336, %v378
    %v426 = vadd.f32 %v337, %v380
    %v427 = vadd.f32 %v338, %v382
    %v428 = vadd.f32 %v339, %v384
    %v429 = vadd.f32 %v340, %v386
    %v430 = vadd.f32 %v341, %v388
    %v431 = vadd.f32 %v342, %v390
    %v432 = vadd.f32 %v343, %v392
    %v433 = vadd.f32 %v344, %v394
    %v434 = vadd.f32 %v345, %v396
    %v435 = vadd.f32 %v346, %v398
    %v436 = vadd.f32 %v347, %v400
    %v437 = vadd.f32 %v348, %v402
    %v438 = vadd.f32 %v349, %v404
    %v439 = vadd.f32 %v350, %v406
    %v440 = vadd.f32 %v351, %v408
    %v442 = vlaneseq
    %v443 = vshrl.u32 %v442, 7
    %v444 = vsub.s32 0, %v443
    %v445 = vrot.slane %v245, %v444
    %v447 = vadd.f32 %v425, %v445
    %v448 = vadd.f32 %v426, %v445
    %v449 = vadd.f32 %v427, %v445
    %v450 = vadd.f32 %v428, %v445
    %v451 = vadd.f32 %v429, %v445
    %v452 = vadd.f32 %v430, %v445
    %v453 = vadd.f32 %v431, %v445
    %v454 = vadd.f32 %v432, %v445
    %v455 = vadd.f32 %v433, %v445
    %v456 = vadd.f32 %v434, %v445
    %v457 = vadd.f32 %v435, %v445
    %v458 = vadd.f32 %v436, %v445
    %v459 = vadd.f32 %v437, %v445
    %v460 = vadd.f32 %v438, %v445
    %v461 = vadd.f32 %v439, %v445
    %v462 = vadd.f32 %v440, %v445
    %v463 = vmax.f32 %v447, 0.0
    %v464 = vmax.f32 %v448, 0.0
    %v465 = vmax.f32 %v449, 0.0
    %v466 = vmax.f32 %v450, 0.0
    %v467 = vmax.f32 %v451, 0.0
    %v468 = vmax.f32 %v452, 0.0
    %v469 = vmax.f32 %v453, 0.0
    %v470 = vmax.f32 %v454, 0.0
    %v471 = vmax.f32 %v455, 0.0
    %v472 = vmax.f32 %v456, 0.0
    %v473 = vmax.f32 %v457, 0.0
    %v474 = vmax.f32 %v458, 0.0
    %v475 = vmax.f32 %v459, 0.0
    %v476 = vmax.f32 %v460, 0.0
    %v477 = vmax.f32 %v461, 0.0
    %v478 = vmax.f32 %v462, 0.0
    %vm479 = vcmask 64512
    %v480 = vsel %vm479, %v463, -inf
    %vm481 = vcmask 62464
    %v482 = vsel %vm481, %v464, -inf
    %v483 = vmax.f32 %v480, %v482
    %v484 = vrot.slane %v483, 4
    %v485 = vmax.f32 %v483, %v484
    %v486 = vrot.slane %v485, 2
    %v487 = vmax.f32 %v485, %v486
    %v488 = vrot.slane %v487, 1
    %v489 = vmax.f32 %v487, %v488
    %v490 = vsel %vm479, %v465, -inf
    %v491 = vsel %vm481, %v466, -inf
    %v492 = vmax.f32 %v490, %v491
    %v493 = vrot.slane %v492, 4
    %v494 = vmax.f32 %v492, %v493
    %v495 = vrot.slane %v494, 2
    %v496 = vmax.f32 %v494, %v495
    %v497 = vrot.slane %v496, 1
    %v498 = vmax.f32 %v496, %v497
    %v499 = vsel %vm479, %v467, -inf
    %v500 = vsel %vm481, %v468, -inf
    %v501 = vmax.f32 %v499, %v500
    %v502 = vrot.slane %v501, 4
    %v503 = vmax.f32 %v501, %v502
    %v504 = vrot.slane %v503, 2
    %v505 = vmax.f32 %v503, %v504
    %v506 = vrot.slane %v505, 1
    %v507 = vmax.f32 %v505, %v506
    %v508 = vsel %vm479, %v469, -inf
    %v509 = vsel %vm481, %v470, -inf
    %v510 = vmax.f32 %v508, %v509
    %v511 = vrot.slane %v510, 4
    %v512 = vmax.f32 %v510, %v511
    %v513 = vrot.slane %v512, 2
    %v514 = vmax.f32 %v512, %v513
    %v515 = vrot.slane %v514, 1
    %v516 = vmax.f32 %v514, %v515
    %v517 = vsel %vm479, %v471, -inf
    %v518 = vsel %vm481, %v472, -inf
    %v519 = vmax.f32 %v517, %v518
    %v520 = vrot.slane %v519, 4
    %v521 = vmax.f32 %v519, %v520
    %v522 = vrot.slane %v521, 2
    %v523 = vmax.f32 %v521, %v522
    %v524 = vrot.slane %v523, 1
    %v525 = vmax.f32 %v523, %v524
    %v526 = vsel %vm479, %v473, -inf
    %v527 = vsel %vm481, %v474, -inf
    %v528 = vmax.f32 %v526, %v527
    %v529 = vrot.slane %v528, 4
    %v530 = vmax.f32 %v528, %v529
    %v531 = vrot.slane %v530, 2
    %v532 = vmax.f32 %v530, %v531
    %v533 = vrot.slane %v532, 1
    %v534 = vmax.f32 %v532, %v533
    %v535 = vsel %vm479, %v475, -inf
    %v536 = vsel %vm481, %v476, -inf
    %v537 = vmax.f32 %v535, %v536
    %v538 = vrot.slane %v537, 4
    %v539 = vmax.f32 %v537, %v538
    %v540 = vrot.slane %v539, 2
    %v541 = vmax.f32 %v539, %v540
    %v542 = vrot.slane %v541, 1
    %v543 = vmax.f32 %v541, %v542
    %v544 = vsel %vm479, %v477, -inf
    %v545 = vsel %vm481, %v478, -inf
    %v546 = vmax.f32 %v544, %v545
    %v547 = vrot.slane %v546, 4
    %v548 = vmax.f32 %v546, %v547
    %v549 = vrot.slane %v548, 2
    %v550 = vmax.f32 %v548, %v549
    %v551 = vrot.slane %v550, 1
    %v552 = vmax.f32 %v550, %v551
    %v554 = vlaneseq
    %v555 = vshrl.u32 %v554, 7
    %v556 = vsub.s32 0, %v555
    %v557 = vrot.slane %v246, %v556
    %v559 = vmul.f32 %v489, %v557
    %v560 = vmul.f32 %v498, %v557
    %v561 = vmul.f32 %v507, %v557
    %v562 = vmul.f32 %v516, %v557
    %v563 = vmul.f32 %v525, %v557
    %v564 = vmul.f32 %v534, %v557
    %v565 = vmul.f32 %v543, %v557
    %v566 = vmul.f32 %v552, %v557
    %v575 = vrot.slane %v560, 7
    %vm576 = vcmask 1041409
    %v577 = vsel %vm576, %v575, %v559
    %v578 = vrot.slane %v561, 6
    %vm579 = vcmask 1042434
    %v580 = vsel %vm579, %v578, %v577
    %v581 = vrot.slane %v562, 5
    %vm582 = vcmask 1043459
    %v583 = vsel %vm582, %v581, %v580
    %v584 = vrot.slane %v563, 4
    %vm585 = vcmask 1044484
    %v586 = vsel %vm585, %v584, %v583
    %v587 = vrot.slane %v564, 3
    %vm588 = vcmask 1045509
    %v589 = vsel %vm588, %v587, %v586
    %v590 = vrot.slane %v565, 2
    %vm591 = vcmask 1046534
    %v592 = vsel %vm591, %v590, %v589
    %v593 = vrot.slane %v566, 1
    %vm594 = vcmask 1047559
    %v595 = vsel %vm594, %v593, %v592
    %v597 = vsel %vm479, %v595, 0.0
    %598 = vadd.xlane.f32.xlu0 %v597
    %v599 = vpop.xlane.xlu0 %598
    %v600 = vadd.f32 %v599, 0.0
    %vm601 = vcmask 1044480
    %v602 = vrot.slane %v183, 3
    %v603 = vrot.slane %v186, 3
    %v604 = vsel %vm601, %v602, %v603
    %v605 = vrot.slane %v191, 3
    %v606 = vrot.slane %v194, 3
    %v607 = vsel %vm601, %v605, %v606
    %v608 = vrot.slane %v199, 3
    %v609 = vrot.slane %v202, 3
    %v610 = vsel %vm601, %v608, %v609
    %v611 = vrot.slane %v207, 3
    %v612 = vrot.slane %v210, 3
    %v613 = vsel %vm601, %v611, %v612
    %v614 = vrot.slane %v215, 3
    %v615 = vrot.slane %v218, 3
    %v616 = vsel %vm601, %v614, %v615
    %v617 = vrot.slane %v223, 3
    %v618 = vrot.slane %v226, 3
    %v619 = vsel %vm601, %v617, %v618
    %v620 = vrot.slane %v231, 3
    %v621 = vrot.slane %v234, 3
    %v622 = vsel %vm601, %v620, %v621
    %v623 = vrot.slane %v239, 3
    %v624 = vrot.slane %v242, 3
    %v625 = vsel %vm601, %v623, %v624
    %626 = vrot.lane.b32.xlu0 %v604, 104
    %v627 = vpop.permute.xlu0 %626
    %628 = vrot.lane.b32.xlu0 %v603, 104
    %v629 = vpop.permute.xlu0 %628
    %630 = vrot.lane.b32.xlu0 %v607, 104
    %v631 = vpop.permute.xlu0 %630
    %632 = vrot.lane.b32.xlu0 %v606, 104
    %v633 = vpop.permute.xlu0 %632
    %634 = vrot.lane.b32.xlu0 %v610, 104
    %v635 = vpop.permute.xlu0 %634
    %636 = vrot.lane.b32.xlu0 %v609, 104
    %v637 = vpop.permute.xlu0 %636
    %638 = vrot.lane.b32.xlu0 %v613, 104
    %v639 = vpop.permute.xlu0 %638
    %640 = vrot.lane.b32.xlu0 %v612, 104
    %v641 = vpop.permute.xlu0 %640
    %642 = vrot.lane.b32.xlu0 %v616, 104
    %v643 = vpop.permute.xlu0 %642
    %644 = vrot.lane.b32.xlu0 %v615, 104
    %v645 = vpop.permute.xlu0 %644
    %646 = vrot.lane.b32.xlu0 %v619, 104
    %v647 = vpop.permute.xlu0 %646
    %648 = vrot.lane.b32.xlu0 %v618, 104
    %v649 = vpop.permute.xlu0 %648
    %650 = vrot.lane.b32.xlu0 %v622, 104
    %v651 = vpop.permute.xlu0 %650
    %652 = vrot.lane.b32.xlu0 %v621, 104
    %v653 = vpop.permute.xlu0 %652
    %654 = vrot.lane.b32.xlu0 %v625, 104
    %v655 = vpop.permute.xlu0 %654
    %656 = vrot.lane.b32.xlu0 %v624, 104
    %v657 = vpop.permute.xlu0 %656
    %v674 = vadd.f32 %v425, %v627
    %v675 = vadd.f32 %v426, %v629
    %v676 = vadd.f32 %v427, %v631
    %v677 = vadd.f32 %v428, %v633
    %v678 = vadd.f32 %v429, %v635
    %v679 = vadd.f32 %v430, %v637
    %v680 = vadd.f32 %v431, %v639
    %v681 = vadd.f32 %v432, %v641
    %v682 = vadd.f32 %v433, %v643
    %v683 = vadd.f32 %v434, %v645
    %v684 = vadd.f32 %v435, %v647
    %v685 = vadd.f32 %v436, %v649
    %v686 = vadd.f32 %v437, %v651
    %v687 = vadd.f32 %v438, %v653
    %v688 = vadd.f32 %v439, %v655
    %v689 = vadd.f32 %v440, %v657
    %690 = vrot.lane.b32.xlu0 %v445, 16
    %v691 = vpop.permute.xlu0 %690
    %v693 = vadd.f32 %v674, %v691
    %v694 = vadd.f32 %v675, %v691
    %v695 = vadd.f32 %v676, %v691
    %v696 = vadd.f32 %v677, %v691
    %v697 = vadd.f32 %v678, %v691
    %v698 = vadd.f32 %v679, %v691
    %v699 = vadd.f32 %v680, %v691
    %v700 = vadd.f32 %v681, %v691
    %v701 = vadd.f32 %v682, %v691
    %v702 = vadd.f32 %v683, %v691
    %v703 = vadd.f32 %v684, %v691
    %v704 = vadd.f32 %v685, %v691
    %v705 = vadd.f32 %v686, %v691
    %v706 = vadd.f32 %v687, %v691
    %v707 = vadd.f32 %v688, %v691
    %v708 = vadd.f32 %v689, %v691
    %v709 = vmax.f32 %v693, 0.0
    %v710 = vmax.f32 %v694, 0.0
    %v711 = vmax.f32 %v695, 0.0
    %v712 = vmax.f32 %v696, 0.0
    %v713 = vmax.f32 %v697, 0.0
    %v714 = vmax.f32 %v698, 0.0
    %v715 = vmax.f32 %v699, 0.0
    %v716 = vmax.f32 %v700, 0.0
    %v717 = vmax.f32 %v701, 0.0
    %v718 = vmax.f32 %v702, 0.0
    %v719 = vmax.f32 %v703, 0.0
    %v720 = vmax.f32 %v704, 0.0
    %v721 = vmax.f32 %v705, 0.0
    %v722 = vmax.f32 %v706, 0.0
    %v723 = vmax.f32 %v707, 0.0
    %v724 = vmax.f32 %v708, 0.0
    %vm725 = vcmask 261312
    %v726 = vsel %vm725, %v709, -inf
    %vm727 = vcmask 258240
    %v728 = vsel %vm727, %v710, -inf
    %v729 = vmax.f32 %v726, %v728
    %v730 = vrot.slane %v729, 4
    %v731 = vmax.f32 %v729, %v730
    %v732 = vrot.slane %v731, 2
    %v733 = vmax.f32 %v731, %v732
    %v734 = vrot.slane %v733, 1
    %v735 = vmax.f32 %v733, %v734
    %v736 = vsel %vm725, %v711, -inf
    %v737 = vsel %vm727, %v712, -inf
    %v738 = vmax.f32 %v736, %v737
    %v739 = vrot.slane %v738, 4
    %v740 = vmax.f32 %v738, %v739
    %v741 = vrot.slane %v740, 2
    %v742 = vmax.f32 %v740, %v741
    %v743 = vrot.slane %v742, 1
    %v744 = vmax.f32 %v742, %v743
    %v745 = vsel %vm725, %v713, -inf
    %v746 = vsel %vm727, %v714, -inf
    %v747 = vmax.f32 %v745, %v746
    %v748 = vrot.slane %v747, 4
    %v749 = vmax.f32 %v747, %v748
    %v750 = vrot.slane %v749, 2
    %v751 = vmax.f32 %v749, %v750
    %v752 = vrot.slane %v751, 1
    %v753 = vmax.f32 %v751, %v752
    %v754 = vsel %vm725, %v715, -inf
    %v755 = vsel %vm727, %v716, -inf
    %v756 = vmax.f32 %v754, %v755
    %v757 = vrot.slane %v756, 4
    %v758 = vmax.f32 %v756, %v757
    %v759 = vrot.slane %v758, 2
    %v760 = vmax.f32 %v758, %v759
    %v761 = vrot.slane %v760, 1
    %v762 = vmax.f32 %v760, %v761
    %v763 = vsel %vm725, %v717, -inf
    %v764 = vsel %vm727, %v718, -inf
    %v765 = vmax.f32 %v763, %v764
    %v766 = vrot.slane %v765, 4
    %v767 = vmax.f32 %v765, %v766
    %v768 = vrot.slane %v767, 2
    %v769 = vmax.f32 %v767, %v768
    %v770 = vrot.slane %v769, 1
    %v771 = vmax.f32 %v769, %v770
    %v772 = vsel %vm725, %v719, -inf
    %v773 = vsel %vm727, %v720, -inf
    %v774 = vmax.f32 %v772, %v773
    %v775 = vrot.slane %v774, 4
    %v776 = vmax.f32 %v774, %v775
    %v777 = vrot.slane %v776, 2
    %v778 = vmax.f32 %v776, %v777
    %v779 = vrot.slane %v778, 1
    %v780 = vmax.f32 %v778, %v779
    %v781 = vsel %vm725, %v721, -inf
    %v782 = vsel %vm727, %v722, -inf
    %v783 = vmax.f32 %v781, %v782
    %v784 = vrot.slane %v783, 4
    %v785 = vmax.f32 %v783, %v784
    %v786 = vrot.slane %v785, 2
    %v787 = vmax.f32 %v785, %v786
    %v788 = vrot.slane %v787, 1
    %v789 = vmax.f32 %v787, %v788
    %v790 = vsel %vm725, %v723, -inf
    %v791 = vsel %vm727, %v724, -inf
    %v792 = vmax.f32 %v790, %v791
    %v793 = vrot.slane %v792, 4
    %v794 = vmax.f32 %v792, %v793
    %v795 = vrot.slane %v794, 2
    %v796 = vmax.f32 %v794, %v795
    %v797 = vrot.slane %v796, 1
    %v798 = vmax.f32 %v796, %v797
    %799 = vrot.lane.b32.xlu0 %v557, 16
    %v800 = vpop.permute.xlu0 %799
    %v802 = vmul.f32 %v735, %v800
    %v803 = vmul.f32 %v744, %v800
    %v804 = vmul.f32 %v753, %v800
    %v805 = vmul.f32 %v762, %v800
    %v806 = vmul.f32 %v771, %v800
    %v807 = vmul.f32 %v780, %v800
    %v808 = vmul.f32 %v789, %v800
    %v809 = vmul.f32 %v798, %v800
    %v818 = vrot.slane %v803, 7
    %v819 = vsel %vm576, %v818, %v802
    %v820 = vrot.slane %v804, 6
    %v821 = vsel %vm579, %v820, %v819
    %v822 = vrot.slane %v805, 5
    %v823 = vsel %vm582, %v822, %v821
    %v824 = vrot.slane %v806, 4
    %v825 = vsel %vm585, %v824, %v823
    %v826 = vrot.slane %v807, 3
    %v827 = vsel %vm588, %v826, %v825
    %v828 = vrot.slane %v808, 2
    %v829 = vsel %vm591, %v828, %v827
    %v830 = vrot.slane %v809, 1
    %v831 = vsel %vm594, %v830, %v829
    %832 = vrot.lane.b32.xlu0 %v831, 104
    %v833 = vpop.permute.xlu0 %832
    %v835 = vsel %vm479, %v833, 0.0
    %836 = vadd.xlane.f32.xlu0 %v835
    %v837 = vpop.xlane.xlu0 %836
    %v838 = vadd.f32 %v600, %v837
    %vm839 = vcmask 1043456
    %v840 = vrot.slane %v183, 4
    %v841 = vrot.slane %v186, 4
    %v842 = vsel %vm839, %v840, %v841
    %v843 = vrot.slane %v191, 4
    %v844 = vrot.slane %v194, 4
    %v845 = vsel %vm839, %v843, %v844
    %v846 = vrot.slane %v199, 4
    %v847 = vrot.slane %v202, 4
    %v848 = vsel %vm839, %v846, %v847
    %v849 = vrot.slane %v207, 4
    %v850 = vrot.slane %v210, 4
    %v851 = vsel %vm839, %v849, %v850
    %v852 = vrot.slane %v215, 4
    %v853 = vrot.slane %v218, 4
    %v854 = vsel %vm839, %v852, %v853
    %v855 = vrot.slane %v223, 4
    %v856 = vrot.slane %v226, 4
    %v857 = vsel %vm839, %v855, %v856
    %v858 = vrot.slane %v231, 4
    %v859 = vrot.slane %v234, 4
    %v860 = vsel %vm839, %v858, %v859
    %v861 = vrot.slane %v239, 4
    %v862 = vrot.slane %v242, 4
    %v863 = vsel %vm839, %v861, %v862
    %864 = vrot.lane.b32.xlu0 %v842, 96
    %v865 = vpop.permute.xlu0 %864
    %866 = vrot.lane.b32.xlu0 %v841, 96
    %v867 = vpop.permute.xlu0 %866
    %868 = vrot.lane.b32.xlu0 %v845, 96
    %v869 = vpop.permute.xlu0 %868
    %870 = vrot.lane.b32.xlu0 %v844, 96
    %v871 = vpop.permute.xlu0 %870
    %872 = vrot.lane.b32.xlu0 %v848, 96
    %v873 = vpop.permute.xlu0 %872
    %874 = vrot.lane.b32.xlu0 %v847, 96
    %v875 = vpop.permute.xlu0 %874
    %876 = vrot.lane.b32.xlu0 %v851, 96
    %v877 = vpop.permute.xlu0 %876
    %878 = vrot.lane.b32.xlu0 %v850, 96
    %v879 = vpop.permute.xlu0 %878
    %880 = vrot.lane.b32.xlu0 %v854, 96
    %v881 = vpop.permute.xlu0 %880
    %882 = vrot.lane.b32.xlu0 %v853, 96
    %v883 = vpop.permute.xlu0 %882
    %884 = vrot.lane.b32.xlu0 %v857, 96
    %v885 = vpop.permute.xlu0 %884
    %886 = vrot.lane.b32.xlu0 %v856, 96
    %v887 = vpop.permute.xlu0 %886
    %888 = vrot.lane.b32.xlu0 %v860, 96
    %v889 = vpop.permute.xlu0 %888
    %890 = vrot.lane.b32.xlu0 %v859, 96
    %v891 = vpop.permute.xlu0 %890
    %892 = vrot.lane.b32.xlu0 %v863, 96
    %v893 = vpop.permute.xlu0 %892
    %894 = vrot.lane.b32.xlu0 %v862, 96
    %v895 = vpop.permute.xlu0 %894
    %v912 = vadd.f32 %v674, %v865
    %v913 = vadd.f32 %v675, %v867
    %v914 = vadd.f32 %v676, %v869
    %v915 = vadd.f32 %v677, %v871
    %v916 = vadd.f32 %v678, %v873
    %v917 = vadd.f32 %v679, %v875
    %v918 = vadd.f32 %v680, %v877
    %v919 = vadd.f32 %v681, %v879
    %v920 = vadd.f32 %v682, %v881
    %v921 = vadd.f32 %v683, %v883
    %v922 = vadd.f32 %v684, %v885
    %v923 = vadd.f32 %v685, %v887
    %v924 = vadd.f32 %v686, %v889
    %v925 = vadd.f32 %v687, %v891
    %v926 = vadd.f32 %v688, %v893
    %v927 = vadd.f32 %v689, %v895
    %928 = vrot.lane.b32.xlu0 %v445, 40
    %v929 = vpop.permute.xlu0 %928
    %v931 = vadd.f32 %v912, %v929
    %v932 = vadd.f32 %v913, %v929
    %v933 = vadd.f32 %v914, %v929
    %v934 = vadd.f32 %v915, %v929
    %v935 = vadd.f32 %v916, %v929
    %v936 = vadd.f32 %v917, %v929
    %v937 = vadd.f32 %v918, %v929
    %v938 = vadd.f32 %v919, %v929
    %v939 = vadd.f32 %v920, %v929
    %v940 = vadd.f32 %v921, %v929
    %v941 = vadd.f32 %v922, %v929
    %v942 = vadd.f32 %v923, %v929
    %v943 = vadd.f32 %v924, %v929
    %v944 = vadd.f32 %v925, %v929
    %v945 = vadd.f32 %v926, %v929
    %v946 = vadd.f32 %v927, %v929
    %v947 = vmax.f32 %v931, 0.0
    %v948 = vmax.f32 %v932, 0.0
    %v949 = vmax.f32 %v933, 0.0
    %v950 = vmax.f32 %v934, 0.0
    %v951 = vmax.f32 %v935, 0.0
    %v952 = vmax.f32 %v936, 0.0
    %v953 = vmax.f32 %v937, 0.0
    %v954 = vmax.f32 %v938, 0.0
    %v955 = vmax.f32 %v939, 0.0
    %v956 = vmax.f32 %v940, 0.0
    %v957 = vmax.f32 %v941, 0.0
    %v958 = vmax.f32 %v942, 0.0
    %v959 = vmax.f32 %v943, 0.0
    %v960 = vmax.f32 %v944, 0.0
    %v961 = vmax.f32 %v945, 0.0
    %v962 = vmax.f32 %v946, 0.0
    %vm963 = vcmask 523712
    %v964 = vsel %vm963, %v947, -inf
    %vm965 = vcmask 519616
    %v966 = vsel %vm965, %v948, -inf
    %v967 = vmax.f32 %v964, %v966
    %v968 = vrot.slane %v967, 4
    %v969 = vmax.f32 %v967, %v968
    %v970 = vrot.slane %v969, 2
    %v971 = vmax.f32 %v969, %v970
    %v972 = vrot.slane %v971, 1
    %v973 = vmax.f32 %v971, %v972
    %v974 = vsel %vm963, %v949, -inf
    %v975 = vsel %vm965, %v950, -inf
    %v976 = vmax.f32 %v974, %v975
    %v977 = vrot.slane %v976, 4
    %v978 = vmax.f32 %v976, %v977
    %v979 = vrot.slane %v978, 2
    %v980 = vmax.f32 %v978, %v979
    %v981 = vrot.slane %v980, 1
    %v982 = vmax.f32 %v980, %v981
    %v983 = vsel %vm963, %v951, -inf
    %v984 = vsel %vm965, %v952, -inf
    %v985 = vmax.f32 %v983, %v984
    %v986 = vrot.slane %v985, 4
    %v987 = vmax.f32 %v985, %v986
    %v988 = vrot.slane %v987, 2
    %v989 = vmax.f32 %v987, %v988
    %v990 = vrot.slane %v989, 1
    %v991 = vmax.f32 %v989, %v990
    %v992 = vsel %vm963, %v953, -inf
    %v993 = vsel %vm965, %v954, -inf
    %v994 = vmax.f32 %v992, %v993
    %v995 = vrot.slane %v994, 4
    %v996 = vmax.f32 %v994, %v995
    %v997 = vrot.slane %v996, 2
    %v998 = vmax.f32 %v996, %v997
    %v999 = vrot.slane %v998, 1
    %v1000 = vmax.f32 %v998, %v999
    %v1001 = vsel %vm963, %v955, -inf
    %v1002 = vsel %vm965, %v956, -inf
    %v1003 = vmax.f32 %v1001, %v1002
    %v1004 = vrot.slane %v1003, 4
    %v1005 = vmax.f32 %v1003, %v1004
    %v1006 = vrot.slane %v1005, 2
    %v1007 = vmax.f32 %v1005, %v1006
    %v1008 = vrot.slane %v1007, 1
    %v1009 = vmax.f32 %v1007, %v1008
    %v1010 = vsel %vm963, %v957, -inf
    %v1011 = vsel %vm965, %v958, -inf
    %v1012 = vmax.f32 %v1010, %v1011
    %v1013 = vrot.slane %v1012, 4
    %v1014 = vmax.f32 %v1012, %v1013
    %v1015 = vrot.slane %v1014, 2
    %v1016 = vmax.f32 %v1014, %v1015
    %v1017 = vrot.slane %v1016, 1
    %v1018 = vmax.f32 %v1016, %v1017
    %v1019 = vsel %vm963, %v959, -inf
    %v1020 = vsel %vm965, %v960, -inf
    %v1021 = vmax.f32 %v1019, %v1020
    %v1022 = vrot.slane %v1021, 4
    %v1023 = vmax.f32 %v1021, %v1022
    %v1024 = vrot.slane %v1023, 2
    %v1025 = vmax.f32 %v1023, %v1024
    %v1026 = vrot.slane %v1025, 1
    %v1027 = vmax.f32 %v1025, %v1026
    %v1028 = vsel %vm963, %v961, -inf
    %v1029 = vsel %vm965, %v962, -inf
    %v1030 = vmax.f32 %v1028, %v1029
    %v1031 = vrot.slane %v1030, 4
    %v1032 = vmax.f32 %v1030, %v1031
    %v1033 = vrot.slane %v1032, 2
    %v1034 = vmax.f32 %v1032, %v1033
    %v1035 = vrot.slane %v1034, 1
    %v1036 = vmax.f32 %v1034, %v1035
    %1037 = vrot.lane.b32.xlu0 %v557, 40
    %v1038 = vpop.permute.xlu0 %1037
    %v1040 = vmul.f32 %v973, %v1038
    %v1041 = vmul.f32 %v982, %v1038
    %v1042 = vmul.f32 %v991, %v1038
    %v1043 = vmul.f32 %v1000, %v1038
    %v1044 = vmul.f32 %v1009, %v1038
    %v1045 = vmul.f32 %v1018, %v1038
    %v1046 = vmul.f32 %v1027, %v1038
    %v1047 = vmul.f32 %v1036, %v1038
    %v1056 = vrot.slane %v1041, 7
    %v1057 = vsel %vm576, %v1056, %v1040
    %v1058 = vrot.slane %v1042, 6
    %v1059 = vsel %vm579, %v1058, %v1057
    %v1060 = vrot.slane %v1043, 5
    %v1061 = vsel %vm582, %v1060, %v1059
    %v1062 = vrot.slane %v1044, 4
    %v1063 = vsel %vm585, %v1062, %v1061
    %v1064 = vrot.slane %v1045, 3
    %v1065 = vsel %vm588, %v1064, %v1063
    %v1066 = vrot.slane %v1046, 2
    %v1067 = vsel %vm591, %v1066, %v1065
    %v1068 = vrot.slane %v1047, 1
    %v1069 = vsel %vm594, %v1068, %v1067
    %1070 = vrot.lane.b32.xlu0 %v1069, 72
    %v1071 = vpop.permute.xlu0 %1070
    %v1073 = vsel %vm479, %v1071, 0.0
    %1074 = vadd.xlane.f32.xlu0 %v1073
    %v1075 = vpop.xlane.xlu0 %1074
    %v1076 = vadd.f32 %v838, %v1075
    %v1077 = vld [vmem:[#allocation2] sm:$0x1]
    %v1079 = vlaneseq
    %v1080 = vshrl.u32 %v1079, 7
    %v1081 = vsub.s32 0, %v1080
    %v1082 = vrot.slane %v1077, %v1081
    %v1084 = vadd.f32 %v1076, %v1082
    %v1085 = vxor.u32 %v1084, 2147483648
    %v1086 = vmul.f32 %v1085, 1.442695
    %v1087 = vpow.pop %v1086
    %v1088 = vadd.f32 %v1087, 1.0
    %v1089 = vrcp.pop %v1088
    %v1090 = vmul.f32 1.0, %v1089
    %vm1091 = vcmask 7168
    %1092 = vst.msk [vmem:[%s5] sm:$0xff] %vm1091, %v1090
    // Predicated region
    $region30: #{tpu_custom_call.1} parent=1 // pred_check
      _
    $region31: #{tpu_custom_call.1} parent=1 // pred_check_branch
      %1094 = sbr.rel (0) target = $region33
    $region32: #{tpu_custom_call.1} parent=1 // pred_region
      _
    $region33: #{tpu_custom_call.1} parent=1 // pred_fallthru
      _
    // Predicated region
    $region34: #{tpu_custom_call.1} parent=1 // pred_check
      _
    $region35: #{tpu_custom_call.1} parent=1 // pred_check_branch
      %1096 = sbr.rel (0) target = $region37
    $region36: #{tpu_custom_call.1} parent=1 // pred_region
      _
    $region37: #{tpu_custom_call.1} parent=1 // pred_fallthru
      _
    %1097 = vsyncpa [#allocation4], 1
    %1098 = vsyncpa [#allocation6], 1

</llo_original>
